<compile_context>
chip_gen: v7x
topology: tpu7x:2x2x1
jax: 0.10.0
libtpu: 0.0.40
codegen_flags: <defaults>
</compile_context>

<pallas_src>
import numpy as np
import jax
import jax.numpy as jnp
from jax.experimental import pallas as pl
from jax.experimental.pallas import tpu as pltpu


# ------------------------------ tuning knobs --------------------------------
_TILE_BUDGET = 16 << 20     # per-grid-step double-buffered block budget (bytes)
_VMEM_FLOOR = 16 << 20      # never request less scoped VMEM than this
_VMEM_CEIL = 40 << 20       # stay well under v7x's 64 MiB physical VMEM
_MAX_ROW_TILE = 1024        # Fourier-filter row-tile upper bound (review: 512-1024)


def _vmem_limit(per_step_bytes):
    """Scoped-VMEM request: per-step working set + slack, clamped for v5e..v7x."""
    return int(min(max(per_step_bytes + (8 << 20), _VMEM_FLOOR), _VMEM_CEIL))


def _pick_tile(n, cap):
    """Largest multiple-of-8 divisor of n that is <= cap (falls back to n, i.e.
    a single full-extent block, which is always a legal BlockSpec)."""
    cap = max(8, min(int(cap), n))
    for t in range(cap - cap % 8, 7, -8):
        if n % t == 0:
            return t
    return n


# ----------------------------------------------------------------------------
# Kernel set 1: hidden-mean scaling of the first C//2 channels of h
# ----------------------------------------------------------------------------
def _freeu_h_scale(h, b_scale):
    """h: (B, C, H, W).  Scales h[:, :C//2] by ((b_scale - 1) * norm_mean + 1),
    where norm_mean is the per-batch min/max-normalized channel mean (exactly the
    PyTorch FreeU_V2 hidden-mean term).  NB: like the PyTorch code, a spatially
    constant channel mean (hmax == hmin) produces Inf/NaN — no eps is added."""
    b_scale = float(b_scale)
    B, C, H, W = h.shape
    HW = H * W
    half = C // 2

    # TODO(synk): lane-pack channels when HW < 128 (H=W=8 deep UNet blocks) so the
    # h stores stay lane-dense; currently those shapes run with masked partial
    # stores (correct, just not optimal).

    if half % 8 != 0:
        # Sublane-misaligned channel split: full-block where() fallback (rare).
        def where_kernel(h_ref, o_ref):
            hv = h_ref[...].astype(jnp.float32)
            hm = jnp.sum(hv, axis=1, keepdims=True) * (1.0 / C)
            hmin = jnp.min(hm, keepdims=True)
            hmax = jnp.max(hm, keepdims=True)
            inv = pl.reciprocal(hmax - hmin, approx=True)          # EUP slot
            factor = ((b_scale - 1.0) * inv) * (hm - hmin) + 1.0
            ch = jax.lax.broadcasted_iota(jnp.int32, (1, C, 1), 1)
            o_ref[...] = jnp.where(ch < half, hv * factor, hv).astype(o_ref.dtype)

        @jax.jit
        def run_fallback(hin):
            h2 = hin.reshape(B, C, HW)
            out = pl.pallas_call(
                where_kernel,
                out_shape=jax.ShapeDtypeStruct((B, C, HW), hin.dtype),
                grid=(B,),
                in_specs=[pl.BlockSpec((1, C, HW), lambda b: (b, 0, 0))],
                out_specs=pl.BlockSpec((1, C, HW), lambda b: (b, 0, 0)),
                compiler_params=pltpu.CompilerParams(
                    dimension_semantics=("parallel",),
                    vmem_limit_bytes=_vmem_limit(4 * C * HW * 4)),
            )(h2)
            return out.reshape(B, C, H, W)

        return run_fallback(h)

    # --- fused single-pass path: one (C, HW) slab per batch ------------------
    single_step_bytes = 2 * (C * HW * 4) + 2 * (half * HW * 4)   # dbl-buffered in+out
    if B >= 2 and single_step_bytes <= _TILE_BUDGET:
        # Output is aliased to the input and only covers the first C//2 channels,
        # so the unscaled half keeps the input bytes and is never rewritten.
        def fused_kernel(h_ref, o_ref):
            hv = h_ref[...].astype(jnp.float32)                     # (1, C, HW)
            hm = jnp.sum(hv, axis=1, keepdims=True) * (1.0 / C)     # (1, 1, HW)
            hmin = jnp.min(hm, keepdims=True)
            hmax = jnp.max(hm, keepdims=True)
            inv = pl.reciprocal(hmax - hmin, approx=True)           # EUP, ~free
            factor = ((b_scale - 1.0) * inv) * (hm - hmin) + 1.0
            o_ref[...] = (hv[:, :half, :] * factor).astype(o_ref.dtype)

        @jax.jit
        def run_fused(hin):
            h2 = hin.reshape(B, C, HW)                 # lane-dense last dim = H*W
            out = pl.pallas_call(
                fused_kernel,
                out_shape=jax.ShapeDtypeStruct((B, C, HW), hin.dtype),
                grid=(B,),
                in_specs=[pl.BlockSpec((1, C, HW), lambda b: (b, 0, 0))],
                out_specs=pl.BlockSpec((1, half, HW), lambda b: (b, 0, 0)),
                input_output_aliases={0: 0},
                compiler_params=pltpu.CompilerParams(
                    dimension_semantics=("parallel",),
                    vmem_limit_bytes=_vmem_limit(single_step_bytes)),
            )(h2)
            return out.reshape(B, C, H, W)

        return run_fused(h)

    # --- two-pass, channel-tiled path ----------------------------------------
    # Used when B == 1 (grid=(B,) would give no pipelining and leave a v7x
    # TensorCore idle) or when one (C, HW) slab exceeds the per-step VMEM budget.
    # Costs one extra read of the first C//2 channels (mem-bound tradeoff).
    tc_m = _pick_tile(C, _TILE_BUDGET // (8 * HW))       # factor pass: 2*tc*HW*4
    tc_s = _pick_tile(half, _TILE_BUDGET // (16 * HW))   # scale pass: 4*tc*HW*4

    def factor_kernel(h_ref, f_ref, acc_ref):
        c = pl.program_id(1)

        @pl.when(c == 0)
        def _():
            acc_ref[...] = jnp.zeros_like(acc_ref)

        acc_ref[...] += jnp.sum(h_ref[...].astype(jnp.float32), axis=1,
                                keepdims=True)

        @pl.when(c == pl.num_programs(1) - 1)
        def _():
            hm = acc_ref[...] * (1.0 / C)
            hmin = jnp.min(hm, keepdims=True)
            hmax = jnp.max(hm, keepdims=True)
            inv = pl.reciprocal(hmax - hmin, approx=True)
            f_ref[...] = ((b_scale - 1.0) * inv) * (hm - hmin) + 1.0

    def scale_kernel(f_ref, h_ref, o_ref):
        o_ref[...] = (h_ref[...].astype(jnp.float32) * f_ref[...]).astype(o_ref.dtype)

    factor_step = 2 * (tc_m * HW * 4) + 3 * (HW * 4)
    scale_step = 4 * (tc_s * HW * 4) + 2 * (HW * 4)

    @jax.jit
    def run_two_pass(hin):
        h2 = hin.reshape(B, C, HW)
        factor = pl.pallas_call(
            factor_kernel,
            out_shape=jax.ShapeDtypeStruct((B, 1, HW), jnp.float32),
            grid=(B, C // tc_m),
            in_specs=[pl.BlockSpec((1, tc_m, HW), lambda b, c: (b, c, 0))],
            out_specs=pl.BlockSpec((1, 1, HW), lambda b, c: (b, 0, 0)),
            scratch_shapes=[pltpu.VMEM((1, 1, HW), jnp.float32)],
            compiler_params=pltpu.CompilerParams(
                dimension_semantics=("parallel", "arbitrary"),
                vmem_limit_bytes=_vmem_limit(factor_step)),
        )(h2)
        out = pl.pallas_call(
            scale_kernel,
            out_shape=jax.ShapeDtypeStruct((B, C, HW), hin.dtype),
            grid=(B, half // tc_s),
            in_specs=[pl.BlockSpec((1, 1, HW), lambda b, c: (b, 0, 0)),
                      pl.BlockSpec((1, tc_s, HW), lambda b, c: (b, c, 0))],
            out_specs=pl.BlockSpec((1, tc_s, HW), lambda b, c: (b, c, 0)),
            input_output_aliases={1: 0},
            compiler_params=pltpu.CompilerParams(
                dimension_semantics=("parallel", "parallel"),
                vmem_limit_bytes=_vmem_limit(scale_step)),
        )(factor, h2)
        return out.reshape(B, C, H, W)

    return run_two_pass(h)


# ----------------------------------------------------------------------------
# Kernel 2: Fourier_filter as y = x + (x @ U) @ V  (low-rank DFT correction)
# ----------------------------------------------------------------------------
def _lowpass_factors(H, W, threshold):
    """Low-rank factorization of the FreeU Fourier low-pass correction.

    Fourier_filter keeps a centered (2*threshold)^2 rectangle of fft-shifted
    frequencies, so the masked fft->ifft round trip is the exact linear map
        y = x + (scale - 1) * LP(x),   LP = L_H (kron) L_W  (separable circulant),
    and each axis factor only involves the kept frequencies.  For the row-major
    flattened image:  x_row @ Re(L_H^T kron L_W^T) = (x_row @ U) @ V with
    U: (HW, r), V: (r, HW), r = 2 * kH * kW  (= 8 for threshold=1)."""
    def kept(n):
        idx = np.arange(n)
        shifted = (idx + n // 2) % n
        m = (shifted >= n // 2 - threshold) & (shifted < n // 2 + threshold)
        return idx[m].astype(np.float64)

    uh, uw = kept(H), kept(W)
    ah, aw = np.arange(H), np.arange(W)
    # L_n^T = P_n @ Q_n with P_n[c,u] = (1/n) e^{-2pi i u c / n},
    #                      Q_n[u,a] =        e^{+2pi i u a / n}
    ph = np.exp(-2j * np.pi * np.outer(ah, uh) / H)            # (H, kH)
    pw = np.exp(-2j * np.pi * np.outer(aw, uw) / W)            # (W, kW)
    qh = np.exp(2j * np.pi * np.outer(uh, ah) / H)             # (kH, H)
    qw = np.exp(2j * np.pi * np.outer(uw, aw) / W)             # (kW, W)
    P = np.kron(ph, pw) / (H * W)                              # (HW, kH*kW)
    Q = np.kron(qh, qw)                                        # (kH*kW, HW)
    # x is real, so only the real part of P @ Q contributes:
    #   Re(P@Q) = [Re P, -Im P] @ [Re Q; Im Q]
    U = np.concatenate([P.real, -P.imag], axis=1)              # (HW, r)
    V = np.concatenate([Q.real, Q.imag], axis=0)               # (r, HW)
    r = U.shape[1]
    r_pad = max(8, ((r + 7) // 8) * 8)                         # sublane-friendly rank
    if r_pad != r:
        U = np.pad(U, ((0, 0), (0, r_pad - r)))
        V = np.pad(V, ((0, r_pad - r), (0, 0)))
    return U.astype(np.float32), V.astype(np.float32)


def _fourier_kernel(x_ref, u_ref, v_ref, o_ref):
    # y = x + (x @ U) @ V.  Both correction matmuls are explicit bf16 x bf16 MXU
    # passes with f32 accumulation; the exact identity term is added in f32, so
    # bf16 rounding only touches the small (scale-1)*lowpass(x) correction.
    xv = x_ref[...].astype(jnp.float32)
    xb = x_ref[...].astype(jnp.bfloat16)
    z = jnp.dot(xb, u_ref[...], preferred_element_type=jnp.float32)
    corr = jnp.dot(z.astype(jnp.bfloat16), v_ref[...],
                   preferred_element_type=jnp.float32)
    o_ref[...] = (xv + corr).astype(o_ref.dtype)


def _fourier_filter(x, threshold, s_scale):
    """Equivalent of Fourier_filter(x, threshold, s_scale) for NCHW x (up to the
    deliberate bf16 rounding of the low-rank correction term)."""
    s_scale = float(s_scale)
    B, C, H, W = x.shape
    HW = H * W

    # Lane packing: fold k channels into one row when HW < 128 so rows stay
    # lane-dense (unmasked stores, full MXU lanes).
    k = 1
    if HW < 128 and 128 % HW == 0 and (B * C) % (128 // HW) == 0:
        k = 128 // HW
    rows = (B * C) // k
    L = k * HW

    U, V = _lowpass_factors(H, W, threshold)
    V = (s_scale - 1.0) * V                      # fold the (scale - 1) factor once
    if k > 1:
        eye = np.eye(k, dtype=np.float32)
        U = np.kron(eye, U)                      # block-diagonal: per-image filter
        V = np.kron(eye, V)
    R = U.shape[1]
    u_dev = jnp.asarray(U, dtype=jnp.bfloat16)   # (L, R), a few KiB
    v_dev = jnp.asarray(V, dtype=jnp.bfloat16)   # (R, L)

    # Row tile: as large as the VMEM budget allows (up to 1024) so per-step DMA
    # dwarfs the ~0.35 us pipeline overhead.
    tm = _pick_tile(rows, min(_MAX_ROW_TILE, max(8, _TILE_BUDGET // (16 * L))))
    per_step = 4 * (tm * L * 4) + 4 * (L * R * 2)

    @jax.jit
    def run(xin, u, v):
        x2 = xin.reshape(rows, L)                # lane-dense rows
        out = pl.pallas_call(
            _fourier_kernel,
            out_shape=jax.ShapeDtypeStruct((rows, L), xin.dtype),
            grid=(rows // tm,),
            in_specs=[pl.BlockSpec((tm, L), lambda i: (i, 0)),
                      pl.BlockSpec((L, R), lambda i: (0, 0)),
                      pl.BlockSpec((R, L), lambda i: (0, 0))],
            out_specs=pl.BlockSpec((tm, L), lambda i: (i, 0)),
            compiler_params=pltpu.CompilerParams(
                dimension_semantics=("parallel",),
                vmem_limit_bytes=_vmem_limit(per_step)),
        )(x2, u, v)
        return out.reshape(B, C, H, W)

    return run(x, u_dev, v_dev)


# ----------------------------------------------------------------------------
# FreeU_V2.forward
# ----------------------------------------------------------------------------
def freeu_v2_forward(h, hsp, scale_map, parameter, transformer_options=None):
    """Functional equivalent of FreeU_V2.forward (returns new arrays instead of
    mutating h in place)."""
    for key, scale in zip(scale_map, parameter):
        if key == h.shape[1]:
            h = _freeu_h_scale(h, float(scale[0]))
            hsp = _fourier_filter(hsp, threshold=1, s_scale=float(scale[1]))
    return h, hsp


# ----------------------------------------------------------------------------
# Reference (numpy, mirrors the PyTorch code) for verification
# ----------------------------------------------------------------------------
def _fourier_filter_ref(x, threshold, scale):
    xf = np.fft.fftn(x.astype(np.float32), axes=(-2, -1))
    xf = np.fft.fftshift(xf, axes=(-2, -1))
    B, C, H, W = xf.shape
    mask = np.ones((B, C, H, W))
    crow, ccol = H // 2, W // 2
    mask[..., crow - threshold:crow + threshold,
         ccol - threshold:ccol + threshold] = scale
    xf = xf * mask
    xf = np.fft.ifftshift(xf, axes=(-2, -1))
    return np.real(np.fft.ifftn(xf, axes=(-2, -1))).astype(x.dtype)


def _freeu_ref(h, hsp, scale_map, parameter):
    h = h.copy()
    for key, scale in zip(scale_map, parameter):
        if key == h.shape[1]:
            B, C = h.shape[:2]
            hm = h.mean(axis=1, keepdims=True)
            hmax = hm.reshape(B, -1).max(axis=-1).reshape(B, 1, 1, 1)
            hmin = hm.reshape(B, -1).min(axis=-1).reshape(B, 1, 1, 1)
            hm = (hm - hmin) / (hmax - hmin)
            h[:, :C // 2] = h[:, :C // 2] * ((scale[0] - 1) * hm + 1)
            hsp = _fourier_filter_ref(hsp, 1, scale[1])
    return h, hsp


if __name__ == "__main__":
    def _check(B, C, H, W, b_scale, s_scale):
        key = jax.random.PRNGKey(0)
        k1, k2 = jax.random.split(key)
        h = jax.random.normal(k1, (B, C, H, W), dtype=jnp.float32)
        hsp = jax.random.normal(k2, (B, C, H, W), dtype=jnp.float32)
        h_np, hsp_np = np.asarray(h), np.asarray(hsp)

        scale_map = [C, 1280]                   # first entry matches h.shape[1]
        parameter = [(b_scale, s_scale), (1.4, 1.4)]

        h_out, hsp_out = freeu_v2_forward(h, hsp, scale_map, parameter)
        h_out, hsp_out = jax.block_until_ready((h_out, hsp_out))

        h_ref, hsp_ref = _freeu_ref(h_np, hsp_np, scale_map, parameter)
        # h uses the EUP approximate reciprocal; hsp's correction term runs
        # through bf16 MXU passes (identity added in f32) — deliberate tradeoffs.
        np.testing.assert_allclose(np.asarray(h_out), h_ref, rtol=1e-3, atol=1e-3)
        np.testing.assert_allclose(np.asarray(hsp_out), hsp_ref,
                                   rtol=2e-3, atol=2e-3)

    # Fast paths: fused per-batch h-scale, unpacked (HW >= 128) Fourier filter.
    _check(B=2, C=16, H=16, W=16, b_scale=1.3, s_scale=1.2)
    # B=1 / small-spatial paths: two-pass channel-tiled h-scale + lane-packed filter.
    _check(B=1, C=16, H=8, W=8, b_scale=1.2, s_scale=1.5)

    print("KERNEL_OK")
</pallas_src>

<mosaic_0001>
module attributes {stable_mosaic.version = 11 : i64} {
  func.func @fused_kernel(%arg0: i32, %arg1: memref<1x16x256xf32, #tpu.memory_space<vmem>>, %arg2: memref<1x8x256xf32, #tpu.memory_space<vmem>>) attributes {dimension_semantics = [#tpu.dimension_semantics<parallel>], iteration_bounds = array<i64: 2>, scalar_prefetch = 0 : i64, scratch_operands = 0 : i64, tpu.core_type = #tpu.core_type<tc>, window_params = [{transform_indices = @transform_0, window_bounds = array<i64: 1, 16, 256>}, {transform_indices = @transform_1, window_bounds = array<i64: 1, 8, 256>}]} {
    %c0 = arith.constant 0 : index
    %c0_0 = arith.constant 0 : index
    %c0_1 = arith.constant 0 : index
    %0 = vector.load %arg1[%c0, %c0_0, %c0_1] : memref<1x16x256xf32, #tpu.memory_space<vmem>>, vector<1x16x256xf32>
    %cst = arith.constant dense<0.000000e+00> : vector<1x256xf32>
    %1 = vector.multi_reduction <add>, %0, %cst [1] : vector<1x16x256xf32> to vector<1x256xf32>
    %2 = vector.shape_cast %1 : vector<1x256xf32> to vector<1x1x256xf32>
    %cst_2 = arith.constant 6.250000e-02 : f32
    %3 = vector.broadcast %cst_2 : f32 to vector<1x1x256xf32>
    %4 = arith.mulf %2, %3 : vector<1x1x256xf32>
    %5 = vector.shape_cast %4 : vector<1x1x256xf32> to vector<1x1x1x256xf32>
    %cst_3 = arith.constant dense<0x7F800000> : vector<1xf32>
    %6 = vector.multi_reduction <minimumf>, %5, %cst_3 [1, 2, 3] : vector<1x1x1x256xf32> to vector<1xf32>
    %7 = vector.shape_cast %6 : vector<1xf32> to vector<1x1x1x1xf32>
    %8 = vector.extract %7[0, 0, 0, 0] : f32 from vector<1x1x1x1xf32>
    %9 = vector.broadcast %8 : f32 to vector<1x1x1xf32>
    %10 = vector.shape_cast %4 : vector<1x1x256xf32> to vector<1x1x1x256xf32>
    %cst_4 = arith.constant dense<0xFF800000> : vector<1xf32>
    %11 = vector.multi_reduction <maximumf>, %10, %cst_4 [1, 2, 3] : vector<1x1x1x256xf32> to vector<1xf32>
    %12 = vector.shape_cast %11 : vector<1xf32> to vector<1x1x1x1xf32>
    %13 = vector.extract %12[0, 0, 0, 0] : f32 from vector<1x1x1x1xf32>
    %14 = vector.broadcast %13 : f32 to vector<1x1x1xf32>
    %15 = arith.subf %14, %9 : vector<1x1x1xf32>
    %16 = tpu.reciprocal %15 {approx = true} : vector<1x1x1xf32> -> vector<1x1x1xf32>
    %cst_5 = arith.constant 3.000000e-01 : f32
    %17 = vector.broadcast %cst_5 : f32 to vector<1x1x1xf32>
    %18 = arith.mulf %17, %16 : vector<1x1x1xf32>
    %19 = vector.broadcast %9 : vector<1x1x1xf32> to vector<1x1x256xf32>
    %20 = arith.subf %4, %19 : vector<1x1x256xf32>
    %21 = vector.broadcast %18 : vector<1x1x1xf32> to vector<1x1x256xf32>
    %22 = arith.mulf %21, %20 : vector<1x1x256xf32>
    %cst_6 = arith.constant 1.000000e+00 : f32
    %23 = vector.broadcast %cst_6 : f32 to vector<1x1x256xf32>
    %24 = arith.addf %22, %23 : vector<1x1x256xf32>
    %25 = vector.extract_strided_slice %0 {offsets = [0, 0, 0], sizes = [1, 8, 256], strides = [1, 1, 1]} : vector<1x16x256xf32> to vector<1x8x256xf32>
    %26 = vector.broadcast %24 : vector<1x1x256xf32> to vector<1x8x256xf32>
    %27 = arith.mulf %25, %26 : vector<1x8x256xf32>
    %c0_7 = arith.constant 0 : index
    %c0_8 = arith.constant 0 : index
    %c0_9 = arith.constant 0 : index
    %28 = vector.load %arg2[%c0_7, %c0_8, %c0_9] : memref<1x8x256xf32, #tpu.memory_space<vmem>>, vector<1x8x256xf32>
    tpu.vector_store %arg2[%c0_7, %c0_8, %c0_9], %27 {strides = array<i32>} : memref<1x8x256xf32, #tpu.memory_space<vmem>>, vector<1x8x256xf32>,
    return
  }
  func.func @transform_0(%arg0: i32) -> (i32, i32, i32) {
    %c0_i32 = arith.constant 0 : i32
    %c0_i32_0 = arith.constant 0 : i32
    %c0_i32_1 = arith.constant 0 : i32
    return %arg0, %c0_i32, %c0_i32_0 : i32, i32, i32
  }
  func.func @transform_1(%arg0: i32) -> (i32, i32, i32) {
    %c0_i32 = arith.constant 0 : i32
    %c0_i32_0 = arith.constant 0 : i32
    %c0_i32_1 = arith.constant 0 : i32
    return %arg0, %c0_i32, %c0_i32_0 : i32, i32, i32
  }
}

</mosaic_0001>

<llo_original>
// kernel: run_fused.1
$region0: #{run_fused.1}
  #allocation0 [shape = 'u32[]', space=smem, size = 0x4, offset = 0x4, fixed_abs, tag = 'smem constant byte address 0x4 - core index']
  #allocation1 [shape = 'u32[144,128]{1,0:T(1,128)}', space=vmem, size = 0x12000, scoped, tag = 'internal scratch']
  %s0 = inlined_call_operand.vmem [shape: f32[2,16,256], index: 0, kind: input, shape index: {}, may-alias: {0,1}]
  %s1 = inlined_call_operand.vmem [shape: f32[2,16,256], index: 1, kind: output, shape index: {}, may-alias: {0,1}]
  %s2 = sld [smem:[#allocation0]]
  $region37: #{run_fused.1} parent=0
    _
  %s4 = ssub.s32 1, %s2
  %s5 = scalar_select 0, %s4, %s2
  loop: start=0, step=1, limit=4
  $region2: #{run_fused.1} parent=0 // loop_pre_header
    _
  $region3: #{run_fused.1} parent=0 // loop_header
    %s7 = sphi 0, %s11
    %p8 = scmp.ge.s32.totalorder %s7, 4
    %s17 = sphi 0, %s19
    %s20 = sphi 0, %s17
    %s21 = sphi 0, %s20
    %s37 = sphi 0, %s21
    %s43 = sphi 0, %s45
    %s46 = sphi 0, %s43
    %s47 = sphi 0, %s46
    %s63 = sphi 0, %s47
  $region4: #{run_fused.1} parent=0 // loop_header_branch
    %10 = sbr.rel (%p8) target = $region8
  $region5: #{run_fused.1} parent=0 // loop_body
    %s12 = ssub.s32 %s7, 1
    %s13 = ssub.s32 %s7, 2
    %s14 = sadd.s32 %s7, 1
    %s15 = ssub.s32 %s7, %s14
    %p16 = scmp.eq.s32.totalorder %s15, 0
    %s18 = sadd.s32 %s17, 1
    %s19 = scalar_select %p16, %s17, %s18
    %p22 = pneg %p16
    %p23 = scmp.eq.s32.totalorder %s7, 1
    %p24 = por %p22, %p23
    %p25 = scmp.ne.s32.totalorder %s17, %s20
    %p26 = scmp.eq.s32.totalorder %s7, 0
    %p27 = por %p25, %p26
    %p28 = scmp.ne.s32.totalorder %s17, %s20
    %p29 = scmp.eq.s32.totalorder %s12, 1
    %p30 = por %p28, %p29
    %p31 = scmp.ne.s32.totalorder %s20, %s21
    %p32 = scmp.eq.s32.totalorder %s12, 0
    %p33 = por %p31, %p32
    %p34 = scmp.ne.s32.totalorder %s20, %s21
    %p35 = scmp.eq.s32.totalorder %s13, 1
    %p36 = por %p34, %p35
    %p38 = scmp.ne.s32.totalorder %s21, %s37
    %p39 = scmp.eq.s32.totalorder %s13, 0
    %p40 = por %p38, %p39
    %s41 = ssub.s32 %s7, %s14
    %p42 = scmp.eq.s32.totalorder %s41, 0
    %s44 = sadd.s32 %s43, 1
    %s45 = scalar_select %p42, %s43, %s44
    %p48 = pneg %p42
    %p49 = scmp.eq.s32.totalorder %s7, 1
    %p50 = por %p48, %p49
    %p51 = scmp.ne.s32.totalorder %s43, %s46
    %p52 = scmp.eq.s32.totalorder %s7, 0
    %p53 = por %p51, %p52
    %p54 = scmp.ne.s32.totalorder %s43, %s46
    %p55 = scmp.eq.s32.totalorder %s12, 1
    %p56 = por %p54, %p55
    %p57 = scmp.ne.s32.totalorder %s46, %s47
    %p58 = scmp.eq.s32.totalorder %s12, 0
    %p59 = por %p57, %p58
    %p60 = scmp.ne.s32.totalorder %s46, %s47
    %p61 = scmp.eq.s32.totalorder %s13, 1
    %p62 = por %p60, %p61
    %p64 = scmp.ne.s32.totalorder %s47, %s63
    %p65 = scmp.eq.s32.totalorder %s13, 0
    %p66 = por %p64, %p65
    %p67 = scmp.le.s32.totalorder 1, %s7
    %p68 = scmp.lt.s32.totalorder %s7, 3
    %p69 = pnand %p67, %p68
    %p70 = pneg %p69
    // Predicated region
    $region9: #{run_fused.1} parent=5 // pred_check
      _
    $region10: #{run_fused.1} parent=5 // pred_check_branch
      %72 = sbr.rel (%p69) target = $region12
    $region11: #{run_fused.1} parent=5 // pred_region
      %s73 = ssub.s32 %s7, 1
    $region12: #{run_fused.1} parent=5 // pred_fallthru
      _
    %p74 = scmp.lt.s32.totalorder %s7, 2
    // Predicated region
    $region13: #{run_fused.1} parent=5 // pred_check
      %p75 = pneg %p74
    $region14: #{run_fused.1} parent=5 // pred_check_branch
      %77 = sbr.rel (%p75) target = $region16
    $region15: #{run_fused.1} parent=5 // pred_region
      // Predicated region
      $region17: #{run_fused.1} parent=15 // pred_check
        %p78 = pneg %p27
      $region18: #{run_fused.1} parent=15 // pred_check_branch
        %80 = sbr.rel (%p78) target = $region20
      $region19: #{run_fused.1} parent=15 // pred_region
        %p81 = scmp.lt.s32.totalorder %s7, 1
        %s82 = scalar_select %p81, %s7, 1
        %s83 = smul.addr %s82, 4
        %s84 = smul.addr %s83, 8
        %s85 = scalar_lea.vmem %s0, %s84
      $region20: #{run_fused.1} parent=15 // pred_fallthru
        _
    $region16: #{run_fused.1} parent=5 // pred_fallthru
      _
    %p86 = scmp.le.s32.totalorder 1, %s7
    %p87 = scmp.lt.s32.totalorder %s7, 3
    %p88 = pnand %p86, %p87
    %p89 = pneg %p88
    // Predicated region
    $region21: #{run_fused.1} parent=5 // pred_check
      _
    $region22: #{run_fused.1} parent=5 // pred_check_branch
      %91 = sbr.rel (%p88) target = $region24
    $region23: #{run_fused.1} parent=5 // pred_region
      %s92 = ssub.s32 %s7, 1
      %p93 = scmp.lt.s32.totalorder %s12, 1
      %s94 = scalar_select %p93, %s12, 1
      %s95 = smul.addr %s94, 4
      %s96 = smul.addr %s95, 8
      %s97 = scalar_lea.vmem %s0, %s96
      %p98 = pneg %p33
      %p99 = pneg %p30
      %p100 = pneg %p59
      %p101 = pneg %p56
      %p102 = scmp.lt.s32.totalorder %s12, 1
      %s103 = scalar_select %p102, %s12, 1
      %s104 = smul.addr %s103, 4
      %s105 = smul.addr %s104, 8
      %s106 = scalar_lea.vmem %s1, %s105
      %p107 = scmp.lt.s32.totalorder %s12, 1
      %s108 = scalar_select %p107, %s12, 1
      %s109 = smul.addr %s108, 4
      %s110 = smul.addr %s109, 8
      %s111 = scalar_lea.vmem %s0, %s110
      %p112 = scmp.lt.s32.totalorder %s12, 1
      %s113 = scalar_select %p112, %s12, 1
      %s114 = smul.addr %s113, 4
      %s115 = smul.addr %s114, 8
      %s116 = scalar_lea.vmem %s1, %s115
      %v117 = vld [vmem:[%s111] sm:$0xff]
      %v118 = vld [vmem:[%s111 + $0x8] sm:$0xff]
      %v119 = vld [vmem:[%s111 + $0x10] sm:$0xff]
      %v120 = vld [vmem:[%s111 + $0x18] sm:$0xff]
      %v121 = vadd.f32 %v117, %v119
      %v122 = vrot.slane %v121, 4
      %v123 = vadd.f32 %v121, %v122
      %v124 = vrot.slane %v123, 2
      %v125 = vadd.f32 %v123, %v124
      %v126 = vrot.slane %v125, 1
      %v127 = vadd.f32 %v125, %v126
      %v128 = vadd.f32 %v118, %v120
      %v129 = vrot.slane %v128, 4
      %v130 = vadd.f32 %v128, %v129
      %v131 = vrot.slane %v130, 2
      %v132 = vadd.f32 %v130, %v131
      %v133 = vrot.slane %v132, 1
      %v134 = vadd.f32 %v132, %v133
      %v135 = vmul.f32 %v127, 0.0625
      %v136 = vmul.f32 %v134, 0.0625
      %v137 = vmin.f32 %v135, %v136
      %138 = vmin.xlane.f32.xlu0 %v137
      %v139 = vpop.xlane.xlu0 %138
      %s140 = vtos %v139
      %v141 = vstv %s140
      %v142 = vmax.f32 %v135, %v136
      %143 = vmax.xlane.f32.xlu0 %v142
      %v144 = vpop.xlane.xlu0 %143
      %s145 = vtos %v144
      %v146 = vstv %s145
      %v147 = vsub.f32 %v146, %v141
      %v148 = vrcp.pop %v147
      %v149 = vmul.f32 %v148, 0.3
      %v150 = vsub.f32 %v135, %v141
      %v151 = vsub.f32 %v136, %v141
      %v152 = vmul.f32 %v149, %v150
      %v153 = vmul.f32 %v149, %v151
      %v154 = vadd.f32 %v152, 1.0
      %v155 = vadd.f32 %v153, 1.0
      %v156 = vmul.f32 %v117, %v154
      %v157 = vmul.f32 %v118, %v155
      %158 = vst [vmem:[%s116] sm:$0xff] %v156
      %159 = vst [vmem:[%s116 + $0x8] sm:$0xff] %v157
      %p160 = scmp.lt.s32.totalorder %s12, 1
      %s161 = scalar_select %p160, %s12, 1
      %s162 = smul.addr %s161, 4
      %s163 = smul.addr %s162, 8
      %s164 = scalar_lea.vmem %s1, %s163
      // Predicated region
      $region25: #{run_fused.1} parent=23 // pred_check
        %p165 = pneg %p56
      $region26: #{run_fused.1} parent=23 // pred_check_branch
        %167 = sbr.rel (%p165) target = $region28
      $region27: #{run_fused.1} parent=23 // pred_region
        _
      $region28: #{run_fused.1} parent=23 // pred_fallthru
        _
    $region24: #{run_fused.1} parent=5 // pred_fallthru
      _
    %p168 = scmp.le.s32.totalorder 2, %s7
    // Predicated region
    $region29: #{run_fused.1} parent=5 // pred_check
      %p169 = pneg %p168
    $region30: #{run_fused.1} parent=5 // pred_check_branch
      %171 = sbr.rel (%p169) target = $region32
    $region31: #{run_fused.1} parent=5 // pred_region
      %s172 = ssub.s32 %s7, 2
      // Predicated region
      $region33: #{run_fused.1} parent=31 // pred_check
        %p173 = pneg %p62
      $region34: #{run_fused.1} parent=31 // pred_check_branch
        %175 = sbr.rel (%p173) target = $region36
      $region35: #{run_fused.1} parent=31 // pred_region
        %p176 = scmp.lt.s32.totalorder %s13, 1
        %s177 = scalar_select %p176, %s13, 1
        %s178 = smul.addr %s177, 4
        %s179 = smul.addr %s178, 8
        %s180 = scalar_lea.vmem %s1, %s179
      $region36: #{run_fused.1} parent=31 // pred_fallthru
        _
    $region32: #{run_fused.1} parent=5 // pred_fallthru
      _
  $region6: #{run_fused.1} parent=0 // loop_footer
    %s11 = sadd.s32 1, %s7
  $region7: #{run_fused.1} parent=0 // loop_footer_branch
    %6 = sbr.rel target = $region3
  $region8: #{run_fused.1} parent=0 // loop_exit
    _

</llo_original>
